<compile_context>
chip_gen: v5e
topology: v5e:2x2
jax: 0.10.0
libtpu: 0.0.40
codegen_flags: <defaults>
</compile_context>

<pallas_src>
import jax
import jax.numpy as jnp
from jax.experimental import pallas as pl
from jax.experimental.pallas import tpu as pltpu


def _round_up(x, m):
    return -(-x // m) * m


def _cdiv(a, b):
    return -(-a // b)


def _tpu_generation():
    try:
        kind = jax.devices()[0].device_kind.lower()
    except Exception:
        return "other"
    if "v7" in kind:
        return "v7x"
    if "v6" in kind:
        return "v6e"
    if "v5" in kind:
        return "v5e"
    return "other"


# tm: token tile target; vmem_cap: compiler vmem limit; resident_weight_cap:
# bf16 (W1 + W2) byte budget below which the resident-weight path is used.
_GEN_CONFIG = {
    "v5e":  dict(tm=384,  vmem_cap=100 << 20, resident_weight_cap=20 << 20),
    "v6e":  dict(tm=1024, vmem_cap=100 << 20, resident_weight_cap=20 << 20),
    "v7x":  dict(tm=512,  vmem_cap=48 << 20,  resident_weight_cap=10 << 20),
    "other": dict(tm=512, vmem_cap=64 << 20,  resident_weight_cap=12 << 20),
}


# --------------------------------------------------------------------------
# Kernels
# --------------------------------------------------------------------------

def _ffn_resident_kernel(x_ref, w1_ref, b1_ref, w2_ref, b2_ref, o_ref):
    """Whole d_ff resident in VMEM: one token tile -> one output tile."""
    x = x_ref[...].astype(jnp.bfloat16)              # in-kernel cast (VPU work)
    h = jnp.dot(x, w1_ref[...], preferred_element_type=jnp.float32)
    h = jnp.maximum(h + b1_ref[...], 0.0)            # bias + ReLU in f32
    y = jnp.dot(h.astype(jnp.bfloat16), w2_ref[...],
                preferred_element_type=jnp.float32)
    o_ref[...] = (y + b2_ref[...]).astype(o_ref.dtype)


def _ffn_streamed_kernel_f32out(x_ref, w1_ref, b1_ref, w2_ref, b2_ref, o_ref):
    """d_ff streamed on the inner 'arbitrary' axis; f32 output is the accumulator."""
    f = pl.program_id(1)
    x = x_ref[...].astype(jnp.bfloat16)
    h = jnp.dot(x, w1_ref[...], preferred_element_type=jnp.float32)
    h = jnp.maximum(h + b1_ref[...], 0.0)
    part = jnp.dot(h.astype(jnp.bfloat16), w2_ref[...],
                   preferred_element_type=jnp.float32)

    @pl.when(f == 0)
    def _():
        o_ref[...] = part + b2_ref[...]              # fold fc2 bias into step 0

    @pl.when(f != 0)
    def _():
        o_ref[...] += part


def _ffn_streamed_kernel_scratch(x_ref, w1_ref, b1_ref, w2_ref, b2_ref, o_ref,
                                 acc_ref):
    """Streamed d_ff with an f32 VMEM accumulator (non-f32 output dtype)."""
    f = pl.program_id(1)
    x = x_ref[...].astype(jnp.bfloat16)
    h = jnp.dot(x, w1_ref[...], preferred_element_type=jnp.float32)
    h = jnp.maximum(h + b1_ref[...], 0.0)
    part = jnp.dot(h.astype(jnp.bfloat16), w2_ref[...],
                   preferred_element_type=jnp.float32)

    @pl.when(f == 0)
    def _():
        acc_ref[...] = part                          # no zero-fill pass

    @pl.when(f != 0)
    def _():
        acc_ref[...] += part

    @pl.when(f == pl.num_programs(1) - 1)
    def _():
        o_ref[...] = (acc_ref[...] + b2_ref[...]).astype(o_ref.dtype)


# --------------------------------------------------------------------------
# Wrapper
# --------------------------------------------------------------------------

def position_wise_feed_forward(x, w1, b1, w2, b2, *, tf=512,
                               force_streamed=False):
    """x: (batch, seq, d_model). w1: (d_model, d_ff), w2: (d_ff, d_model)
    (nn.Linear weights pre-transposed). Returns (batch, seq, d_model)."""
    B, S, D = x.shape
    F = w1.shape[1]
    M = B * S
    out_dtype = x.dtype
    x_isz = jnp.dtype(x.dtype).itemsize
    out_isz = jnp.dtype(out_dtype).itemsize

    gen = _tpu_generation()
    cfg = _GEN_CONFIG.get(gen, _GEN_CONFIG["other"])
    vmem_cap = int(cfg["vmem_cap"])
    budget = int(vmem_cap * 0.9)

    # Weights as bf16 (no-op if the caller already holds bf16 params).
    w1 = w1 if w1.dtype == jnp.bfloat16 else w1.astype(jnp.bfloat16)
    w2 = w2 if w2.dtype == jnp.bfloat16 else w2.astype(jnp.bfloat16)
    b1_2d = b1.reshape(1, F).astype(jnp.float32)
    b2_2d = b2.reshape(1, D).astype(jnp.float32)

    # Activations stay in native dtype; bf16 cast happens inside the kernel.
    x2d = x.reshape(M, D)

    def _pick_tm(need_fn):
        tm = cfg["tm"] if M > cfg["tm"] else M       # tm == M is always legal
        while tm > 128 and need_fn(tm) > budget:     # shrink to fit VMEM
            tm = max(128, ((tm // 2) // 16) * 16)
        if gen == "v7x" and M > 16 and _cdiv(M, tm) == 1:
            # Keep both v7x TensorCores busy on the 'parallel' M axis.
            tm = min(tm, _round_up(_cdiv(M, 2), 16))
        return tm

    weight_bytes_bf16 = 2 * (w1.size + w2.size)      # == 4 * D * F
    resident = (not force_streamed) and (weight_bytes_bf16
                                         <= cfg["resident_weight_cap"])

    if resident:
        # ---------------- resident-weight path (no d_ff grid axis) ----------
        def need(tm):
            return (2 * tm * D * x_isz + 2 * tm * D * out_isz     # x/out tiles
                    + 2 * (weight_bytes_bf16 + F * 4 + D * 4)     # weights+bias
                    + tm * F * 6 + tm * D * 6)                    # temporaries
        tm_eff = _pick_tm(need)
        grid_m = _cdiv(M, tm_eff)

        cost = pl.CostEstimate(
            flops=4 * grid_m * tm_eff * D * F,
            transcendentals=0,
            bytes_accessed=int(M * D * x_isz + M * D * out_isz
                               + weight_bytes_bf16 + (F + D) * 4),
        )

        out2d = pl.pallas_call(
            _ffn_resident_kernel,
            out_shape=jax.ShapeDtypeStruct((M, D), out_dtype),
            grid_spec=pltpu.PrefetchScalarGridSpec(
                num_scalar_prefetch=0,
                grid=(grid_m,),
                in_specs=[
                    pl.BlockSpec((tm_eff, D), lambda i: (i, 0)),  # x tile
                    pl.BlockSpec((D, F), lambda i: (0, 0)),       # W1 (resident)
                    pl.BlockSpec((1, F), lambda i: (0, 0)),       # b1
                    pl.BlockSpec((F, D), lambda i: (0, 0)),       # W2 (resident)
                    pl.BlockSpec((1, D), lambda i: (0, 0)),       # b2
                ],
                out_specs=pl.BlockSpec((tm_eff, D), lambda i: (i, 0)),
            ),
            compiler_params=pltpu.CompilerParams(
                dimension_semantics=("parallel",),
                vmem_limit_bytes=vmem_cap,
            ),
            cost_estimate=cost,
        )(x2d, w1, b1_2d, w2, b2_2d)
        return out2d.reshape(B, S, D)

    # -------------------- streamed-d_ff path --------------------------------
    if F <= tf:
        tf_eff, F_pad = F, F
    else:
        tf_eff = tf                                   # multiple of 128 (default 512)
        F_pad = _round_up(F, tf_eff)

    use_scratch = (out_dtype != jnp.float32)

    def need(tm):
        n = (2 * tm * D * x_isz + 2 * tm * D * out_isz
             + 2 * (2 * D * tf_eff * 2 + tf_eff * 4 + D * 4)
             + tm * tf_eff * 6 + tm * D * 6)
        if use_scratch:
            n += tm * D * 4
        return n
    tm_eff = _pick_tm(need)
    grid_m = _cdiv(M, tm_eff)
    grid_f = F_pad // tf_eff

    # Zero-pad d_ff (exact: relu(0)=0 and padded W2 rows are zero).
    w1p, b1p, w2p = w1, b1_2d, w2
    if F_pad != F:
        w1p = jnp.pad(w1, ((0, 0), (0, F_pad - F)))
        b1p = jnp.pad(b1_2d, ((0, 0), (0, F_pad - F)))
        w2p = jnp.pad(w2, ((0, F_pad - F), (0, 0)))

    cost = pl.CostEstimate(
        flops=4 * grid_m * tm_eff * D * F_pad,
        transcendentals=0,
        bytes_accessed=int(M * D * x_isz + M * D * out_isz
                           + grid_m * (2 * (w1p.size + w2p.size) + F_pad * 4)
                           + D * 4),
    )

    kernel = _ffn_streamed_kernel_scratch if use_scratch else _ffn_streamed_kernel_f32out
    scratch = [pltpu.VMEM((tm_eff, D), jnp.float32)] if use_scratch else []

    out2d = pl.pallas_call(
        kernel,
        out_shape=jax.ShapeDtypeStruct((M, D), out_dtype),
        grid_spec=pltpu.PrefetchScalarGridSpec(
            num_scalar_prefetch=0,
            grid=(grid_m, grid_f),
            in_specs=[
                pl.BlockSpec((tm_eff, D), lambda i, f: (i, 0)),   # x tile
                pl.BlockSpec((D, tf_eff), lambda i, f: (0, f)),   # W1 slice
                pl.BlockSpec((1, tf_eff), lambda i, f: (0, f)),   # b1 slice
                pl.BlockSpec((tf_eff, D), lambda i, f: (f, 0)),   # W2 slice
                pl.BlockSpec((1, D), lambda i, f: (0, 0)),        # b2
            ],
            out_specs=pl.BlockSpec((tm_eff, D), lambda i, f: (i, 0)),
            scratch_shapes=scratch,
        ),
        compiler_params=pltpu.CompilerParams(
            dimension_semantics=("parallel", "arbitrary"),
            vmem_limit_bytes=vmem_cap,
        ),
        cost_estimate=cost,
    )(x2d, w1p, b1p, w2p, b2_2d)
    return out2d.reshape(B, S, D)


if __name__ == "__main__":
    # Small, module-consistent shapes (exercises the resident-weight path).
    batch, seq = 2, 8
    d_model, d_ff = 32, 64

    key = jax.random.PRNGKey(0)
    kx, kw1, kb1, kw2, kb2 = jax.random.split(key, 5)

    x = jax.random.normal(kx, (batch, seq, d_model), dtype=jnp.float32)
    w1 = jax.random.normal(kw1, (d_model, d_ff), dtype=jnp.float32) * 0.05
    b1 = jax.random.normal(kb1, (d_ff,), dtype=jnp.float32) * 0.05
    w2 = jax.random.normal(kw2, (d_ff, d_model), dtype=jnp.float32) * 0.05
    b2 = jax.random.normal(kb2, (d_model,), dtype=jnp.float32) * 0.05

    # Cast weights once at param setup (no per-call weight cast/pad pass).
    w1_bf16 = w1.astype(jnp.bfloat16)
    w2_bf16 = w2.astype(jnp.bfloat16)

    out = position_wise_feed_forward(x, w1_bf16, b1, w2_bf16, b2)
    out = jax.block_until_ready(out)

    ref = jnp.maximum(x @ w1 + b1, 0.0) @ w2 + b2
    assert out.shape == x.shape
    assert jnp.allclose(out, ref, atol=2e-2, rtol=2e-2), "resident path mismatch"

    # Also exercise the streamed-d_ff path (multi-step f accumulation).
    d_model2, d_ff2 = 128, 512
    k2 = jax.random.split(jax.random.PRNGKey(1), 5)
    x2 = jax.random.normal(k2[0], (batch, seq, d_model2), dtype=jnp.float32)
    w12 = jax.random.normal(k2[1], (d_model2, d_ff2), dtype=jnp.float32) * 0.05
    b12 = jax.random.normal(k2[2], (d_ff2,), dtype=jnp.float32) * 0.05
    w22 = jax.random.normal(k2[3], (d_ff2, d_model2), dtype=jnp.float32) * 0.05
    b22 = jax.random.normal(k2[4], (d_model2,), dtype=jnp.float32) * 0.05

    out2 = position_wise_feed_forward(x2, w12, b12, w22, b22,
                                      tf=128, force_streamed=True)
    out2 = jax.block_until_ready(out2)
    ref2 = jnp.maximum(x2 @ w12 + b12, 0.0) @ w22 + b22
    assert jnp.allclose(out2, ref2, atol=2e-2, rtol=2e-2), "streamed path mismatch"

    print("KERNEL_OK")
</pallas_src>

<mosaic_0001>
module attributes {stable_mosaic.version = 11 : i64} {
  func.func @_ffn_resident_kernel(%arg0: i32, %arg1: memref<16x32xf32, #tpu.memory_space<vmem>>, %arg2: memref<32x64xbf16, #tpu.memory_space<vmem>>, %arg3: memref<1x64xf32, #tpu.memory_space<vmem>>, %arg4: memref<64x32xbf16, #tpu.memory_space<vmem>>, %arg5: memref<1x32xf32, #tpu.memory_space<vmem>>, %arg6: memref<16x32xf32, #tpu.memory_space<vmem>>) attributes {dimension_semantics = [#tpu.dimension_semantics<parallel>], iteration_bounds = array<i64: 1>, scalar_prefetch = 0 : i64, scratch_operands = 0 : i64, tpu.core_type = #tpu.core_type<tc>, window_params = [{transform_indices = @transform_0, window_bounds = array<i64: 16, 32>}, {pipeline_mode = #tpu.pipeline_mode<synchronous>, transform_indices = @transform_1, window_bounds = array<i64: 32, 64>}, {pipeline_mode = #tpu.pipeline_mode<synchronous>, transform_indices = @transform_2, window_bounds = array<i64: 1, 64>}, {pipeline_mode = #tpu.pipeline_mode<synchronous>, transform_indices = @transform_3, window_bounds = array<i64: 64, 32>}, {pipeline_mode = #tpu.pipeline_mode<synchronous>, transform_indices = @transform_4, window_bounds = array<i64: 1, 32>}, {transform_indices = @transform_5, window_bounds = array<i64: 16, 32>}]} {
    %c0 = arith.constant 0 : index
    %c0_0 = arith.constant 0 : index
    %0 = vector.load %arg1[%c0, %c0_0] : memref<16x32xf32, #tpu.memory_space<vmem>>, vector<16x32xf32>
    %1 = arith.truncf %0 : vector<16x32xf32> to vector<16x32xbf16>
    %c0_1 = arith.constant 0 : index
    %c0_2 = arith.constant 0 : index
    %2 = vector.load %arg2[%c0_1, %c0_2] : memref<32x64xbf16, #tpu.memory_space<vmem>>, vector<32x64xbf16>
    %cst = arith.constant dense<0.000000e+00> : vector<16x64xf32>
    %3 = tpu.matmul %1, %2, %cst {dimension_numbers = #tpu.dot_dimension_numbers<[1], [0], [0], [1], [0, 0, 1, 1], [], []>} : vector<16x32xbf16>, vector<32x64xbf16>, vector<16x64xf32> -> vector<16x64xf32>
    %c0_3 = arith.constant 0 : index
    %c0_4 = arith.constant 0 : index
    %4 = vector.load %arg3[%c0_3, %c0_4] : memref<1x64xf32, #tpu.memory_space<vmem>>, vector<1x64xf32>
    %5 = vector.broadcast %4 : vector<1x64xf32> to vector<16x64xf32>
    %6 = arith.addf %3, %5 : vector<16x64xf32>
    %cst_5 = arith.constant 0.000000e+00 : f32
    %7 = vector.broadcast %cst_5 : f32 to vector<16x64xf32>
    %8 = arith.maximumf %6, %7 : vector<16x64xf32>
    %9 = arith.truncf %8 : vector<16x64xf32> to vector<16x64xbf16>
    %c0_6 = arith.constant 0 : index
    %c0_7 = arith.constant 0 : index
    %10 = vector.load %arg4[%c0_6, %c0_7] : memref<64x32xbf16, #tpu.memory_space<vmem>>, vector<64x32xbf16>
    %cst_8 = arith.constant dense<0.000000e+00> : vector<16x32xf32>
    %11 = tpu.matmul %9, %10, %cst_8 {dimension_numbers = #tpu.dot_dimension_numbers<[1], [0], [0], [1], [0, 0, 1, 1], [], []>} : vector<16x64xbf16>, vector<64x32xbf16>, vector<16x32xf32> -> vector<16x32xf32>
    %c0_9 = arith.constant 0 : index
    %c0_10 = arith.constant 0 : index
    %12 = vector.load %arg5[%c0_9, %c0_10] : memref<1x32xf32, #tpu.memory_space<vmem>>, vector<1x32xf32>
    %13 = vector.broadcast %12 : vector<1x32xf32> to vector<16x32xf32>
    %14 = arith.addf %11, %13 : vector<16x32xf32>
    %c0_11 = arith.constant 0 : index
    %c0_12 = arith.constant 0 : index
    %15 = vector.load %arg6[%c0_11, %c0_12] : memref<16x32xf32, #tpu.memory_space<vmem>>, vector<16x32xf32>
    tpu.vector_store %arg6[%c0_11, %c0_12], %14 {strides = array<i32>} : memref<16x32xf32, #tpu.memory_space<vmem>>, vector<16x32xf32>,
    return
  }
  func.func @transform_0(%arg0: i32) -> (i32, i32) {
    %c0_i32 = arith.constant 0 : i32
    %c0_i32_0 = arith.constant 0 : i32
    return %arg0, %c0_i32 : i32, i32
  }
  func.func @transform_1(%arg0: i32) -> (i32, i32) {
    %c0_i32 = arith.constant 0 : i32
    %c0_i32_0 = arith.constant 0 : i32
    %c0_i32_1 = arith.constant 0 : i32
    return %c0_i32, %c0_i32_0 : i32, i32
  }
  func.func @transform_2(%arg0: i32) -> (i32, i32) {
    %c0_i32 = arith.constant 0 : i32
    %c0_i32_0 = arith.constant 0 : i32
    %c0_i32_1 = arith.constant 0 : i32
    return %c0_i32, %c0_i32_0 : i32, i32
  }
  func.func @transform_3(%arg0: i32) -> (i32, i32) {
    %c0_i32 = arith.constant 0 : i32
    %c0_i32_0 = arith.constant 0 : i32
    %c0_i32_1 = arith.constant 0 : i32
    return %c0_i32, %c0_i32_0 : i32, i32
  }
  func.func @transform_4(%arg0: i32) -> (i32, i32) {
    %c0_i32 = arith.constant 0 : i32
    %c0_i32_0 = arith.constant 0 : i32
    %c0_i32_1 = arith.constant 0 : i32
    return %c0_i32, %c0_i32_0 : i32, i32
  }
  func.func @transform_5(%arg0: i32) -> (i32, i32) {
    %c0_i32 = arith.constant 0 : i32
    %c0_i32_0 = arith.constant 0 : i32
    return %arg0, %c0_i32 : i32, i32
  }
}

</mosaic_0001>

<llo_original>
// kernel: tpu_custom_call.1
$region0: #{tpu_custom_call.1}
  #allocation0 [shape = 'u32[]', space=smem, size = 0x4, offset = 0x4, fixed_abs, tag = 'smem constant byte address 0x4 - core index']
  #allocation1 [shape = 'u32[72,128]{1,0:T(1,128)}', space=vmem, size = 0x9000, scoped, tag = 'internal scratch']
  %s0 = inlined_call_operand.vmem [shape: f32[16,32], index: 0, kind: input, shape index: {}]
  %s1 = inlined_call_operand.vmem [shape: bf16[32,64], index: 1, kind: input, shape index: {}]
  %s2 = inlined_call_operand.vmem [shape: f32[1,64], index: 2, kind: input, shape index: {}]
  %s3 = inlined_call_operand.vmem [shape: bf16[64,32], index: 3, kind: input, shape index: {}]
  %s4 = inlined_call_operand.vmem [shape: f32[1,32], index: 4, kind: input, shape index: {}]
  %s5 = inlined_call_operand.hbm [shape: f32[16,32], index: 5, kind: output, shape index: {}]
  %s6 = sld [smem:[#allocation0]]
  $region30: #{tpu_custom_call.1} parent=0
    _
  %s8 = ssub.s32 1, %s6
  %s9 = scalar_select 0, %s8, %s6
  $region1: #{tpu_custom_call.1} parent=0
    #allocation2 [shape = 'u8[8192]{0}', space=vmem, size = 0x2000, scoped, tag = 'output window, operand 0, single buffered']
    #allocation3 [shape = 's32[1]{0}', space=sflag, size = 0x4, scoped, tag = 'scoped memory for tpu_custom_call.1']
    %10 = vsyncpa [#allocation3], 0
    // Predicated region
    $region2: #{tpu_custom_call.1} parent=1 // pred_check
      _
    $region3: #{tpu_custom_call.1} parent=1 // pred_check_branch
      %12 = sbr.rel (0) target = $region5
    $region4: #{tpu_custom_call.1} parent=1 // pred_region
      _
    $region5: #{tpu_custom_call.1} parent=1 // pred_fallthru
      _
    // Predicated region
    $region6: #{tpu_custom_call.1} parent=1 // pred_check
      _
    $region7: #{tpu_custom_call.1} parent=1 // pred_check_branch
      %14 = sbr.rel (0) target = $region9
    $region8: #{tpu_custom_call.1} parent=1 // pred_region
      _
    $region9: #{tpu_custom_call.1} parent=1 // pred_fallthru
      _
    // Predicated region
    $region10: #{tpu_custom_call.1} parent=1 // pred_check
      _
    $region11: #{tpu_custom_call.1} parent=1 // pred_check_branch
      %16 = sbr.rel (0) target = $region13
    $region12: #{tpu_custom_call.1} parent=1 // pred_region
      _
    $region13: #{tpu_custom_call.1} parent=1 // pred_fallthru
      _
    // Predicated region
    $region14: #{tpu_custom_call.1} parent=1 // pred_check
      _
    $region15: #{tpu_custom_call.1} parent=1 // pred_check_branch
      %18 = sbr.rel (0) target = $region17
    $region16: #{tpu_custom_call.1} parent=1 // pred_region
      _
    $region17: #{tpu_custom_call.1} parent=1 // pred_fallthru
      _
    // Predicated region
    $region18: #{tpu_custom_call.1} parent=1 // pred_check
      _
    $region19: #{tpu_custom_call.1} parent=1 // pred_check_branch
      %20 = sbr.rel (0) target = $region21
    $region20: #{tpu_custom_call.1} parent=1 // pred_region
      _
    $region21: #{tpu_custom_call.1} parent=1 // pred_fallthru
      _
    %v22 = vld [vmem:[%s0] sm:$0xff]
    %v23 = vld [vmem:[%s0 + $0x8] sm:$0xff]
    %v24 = vpack.c.bf16 %v23, %v22
    %v25 = vld [vmem:[%s1] sm:$0xf]
    %v26 = vld [vmem:[%s1 + $0x4] sm:$0xf]
    %v27 = vld [vmem:[%s1 + $0x8] sm:$0xf]
    %v28 = vld [vmem:[%s1 + $0xc] sm:$0xf]
    %v29 = vld [vmem:[%s2] sm:$0x1]
    %v31 = vperm.slane %v29, 0
    %v37 = vunpack.c.l.b16 %v25
    %v38 = vunpack.c.l.b16 %v26
    %v39 = vunpack.c.l.b16 %v27
    %v40 = vunpack.c.l.b16 %v28
    %v41 = vpack.c.b16 %v38, %v37
    %v42 = vpack.c.b16 %v40, %v39
    %vm45 = vcmask 261120
    %v47 = vsel %vm45, %v24, 0
    %49 = vmatpush.bf16.msra.mxu0 0
    %50 = vmatpush.bf16.msra.mxu0 0
    %51 = vmatpush.bf16.msra.mxu0 0
    %52 = vmatpush.bf16.msra.mxu0 0
    %53 = vmatpush.bf16.msra.mxu0 0
    %54 = vmatpush.bf16.msra.mxu0 0
    %55 = vmatpush.bf16.msra.mxu0 %v42
    %56 = vmatpush.bf16.msra.mxu0 %v41
    %57 = vmatmul.bf16.gmra.mxu0 %v47
    %v58 = vpop.f32.mrf.mxu0
    %v59 = vadd.f32 %v31, %v58
    %v60 = vpop.f32.mrf.mxu0
    %v61 = vadd.f32 %v31, %v60
    %62 = vdwg.mxu0
    %v63 = vmax.f32 %v59, 0.0
    %v64 = vmax.f32 %v61, 0.0
    %v65 = vpack.c.bf16 %v64, %v63
    %v66 = vld [vmem:[%s3] sm:$0xf]
    %v67 = vld [vmem:[%s3 + $0x4] sm:$0xf]
    %v68 = vld [vmem:[%s3 + $0x8] sm:$0xf]
    %v69 = vld [vmem:[%s3 + $0xc] sm:$0xf]
    %v70 = vld [vmem:[%s3 + $0x10] sm:$0xf]
    %v71 = vld [vmem:[%s3 + $0x14] sm:$0xf]
    %v72 = vld [vmem:[%s3 + $0x18] sm:$0xf]
    %v73 = vld [vmem:[%s3 + $0x1c] sm:$0xf]
    %v74 = vld [vmem:[%s4] sm:$0x1]
    %v76 = vperm.slane %v74, 0
    %v86 = vunpack.c.l.b16 %v66
    %v87 = vunpack.c.l.b16 %v67
    %v88 = vunpack.c.l.b16 %v68
    %v89 = vunpack.c.l.b16 %v69
    %v90 = vunpack.c.l.b16 %v70
    %v91 = vunpack.c.l.b16 %v71
    %v92 = vunpack.c.l.b16 %v72
    %v93 = vunpack.c.l.b16 %v73
    %v94 = vpack.c.b16 %v87, %v86
    %v95 = vpack.c.b16 %v89, %v88
    %v96 = vpack.c.b16 %v91, %v90
    %v97 = vpack.c.b16 %v93, %v92
    %vm102 = vcmask 523264
    %v104 = vsel %vm102, %v65, 0
    %106 = vmatpush.bf16.msra.mxu0 0
    %107 = vmatpush.bf16.msra.mxu0 0
    %108 = vmatpush.bf16.msra.mxu0 0
    %109 = vmatpush.bf16.msra.mxu0 0
    %110 = vmatpush.bf16.msra.mxu0 %v97
    %111 = vmatpush.bf16.msra.mxu0 %v96
    %112 = vmatpush.bf16.msra.mxu0 %v95
    %113 = vmatpush.bf16.msra.mxu0 %v94
    %114 = vmatmul.bf16.gmra.mxu0 %v104
    %v115 = vpop.f32.mrf.mxu0
    %v116 = vadd.f32 %v76, %v115
    %v117 = vpop.f32.mrf.mxu0
    %v118 = vadd.f32 %v76, %v117
    %119 = vdwg.mxu0
    %120 = vst.msk [vmem:[#allocation2] sm:$0xff] %vm45, %v116
    %121 = vst.msk [vmem:[#allocation2 + $0x8] sm:$0xff] %vm45, %v118
    // Predicated region
    $region22: #{tpu_custom_call.1} parent=1 // pred_check
      _
    $region23: #{tpu_custom_call.1} parent=1 // pred_check_branch
      %123 = sbr.rel (0) target = $region25
    $region24: #{tpu_custom_call.1} parent=1 // pred_region
      %125 = vsyncadd [#allocation3], 0
      %s126 = sshll.u32 [#allocation2], 4
      %s127 = int_to_ptr.vmem [resolvable:$true] %s126
      %s128 = sshll.u32 %s5, 4
      %s129 = int_to_ptr.hbm [resolvable:$true] %s128
      %134 = dma.vmem_to_hbm [thread:$0]  %s127, 256, %s129, [#allocation3], 128, 128, 8
    $region25: #{tpu_custom_call.1} parent=1 // pred_fallthru
      _
    // Predicated region
    $region26: #{tpu_custom_call.1} parent=1 // pred_check
      _
    $region27: #{tpu_custom_call.1} parent=1 // pred_check_branch
      %136 = sbr.rel (0) target = $region29
    $region28: #{tpu_custom_call.1} parent=1 // pred_region
      %138 = dma.done [#allocation3], 256
    $region29: #{tpu_custom_call.1} parent=1 // pred_fallthru
      _
    %139 = vsyncpa [#allocation3], 1

</llo_original>
